<compile_context>
chip_gen: v5e
topology: v5e:2x2
jax: 0.10.0
libtpu: 0.0.40
codegen_flags: <defaults>
</compile_context>

<pallas_src>
from functools import partial

import jax
import jax.numpy as jnp
from jax.experimental import pallas as pl
from jax.experimental.pallas import tpu as pltpu


def _rand_uniform_kernel(seed_ref, o_ref):
    """Fill o_ref with uniform [0,1) float32 values derived from seed_ref[0]."""
    b, n = o_ref.shape

    # Unique 32-bit counter per output element.
    row = jax.lax.broadcasted_iota(jnp.int32, (b, n), 0).astype(jnp.uint32)
    col = jax.lax.broadcasted_iota(jnp.int32, (b, n), 1).astype(jnp.uint32)
    idx = row * jnp.uint32(n) + col

    # Mix in the seed (golden-ratio increment), then murmur3 fmix32 finalizer.
    seed = seed_ref[0]
    x = idx + seed * jnp.uint32(0x9E3779B9)
    x = x ^ (x >> jnp.uint32(16))
    x = x * jnp.uint32(0x7FEB352D)
    x = x ^ (x >> jnp.uint32(15))
    x = x * jnp.uint32(0x846CA68B)
    x = x ^ (x >> jnp.uint32(16))

    # Mantissa-fill trick: top 23 random bits as mantissa, exponent 127
    # -> float in [1,2); subtract 1.0 -> uniform [0,1) (torch.rand semantics).
    mantissa = x >> jnp.uint32(9)
    one_to_two = jax.lax.bitcast_convert_type(
        mantissa | jnp.uint32(0x3F800000), jnp.float32
    )
    o_ref[...] = one_to_two - jnp.float32(1.0)


@partial(jax.jit, static_argnames=("num_output",))
def random_baseline_forward(x: jax.Array, num_output: int, seed: jax.Array) -> jax.Array:
    """Pallas equivalent of RandomBaseline.forward: uniform (batch, num_output) floats.

    `x` is only used for its leading (batch) dimension, exactly like the
    PyTorch module.  `seed` is a uint32 device scalar; pass a different seed
    per call to get fresh randoms (torch.rand behavior).
    """
    batch = x.shape[0]
    seed_arr = jnp.reshape(jnp.asarray(seed, dtype=jnp.uint32), (1,))

    # Single block: output is tiny (batch x num_output).  block_shape == full
    # array shape, so no grid / no post-kernel slice is needed.
    # TODO(synk): for very large (batch, num_output) add a tiled grid
    # (e.g. (256, 4096) f32 blocks) so the writeback is double-buffered.
    return pl.pallas_call(
        _rand_uniform_kernel,
        out_shape=jax.ShapeDtypeStruct((batch, num_output), jnp.float32),
        in_specs=[pl.BlockSpec(memory_space=pltpu.MemorySpace.SMEM)],
        out_specs=pl.BlockSpec(memory_space=pltpu.MemorySpace.VMEM),
    )(seed_arr)


if __name__ == "__main__":
    # Module config: RandomBaseline(classes=[0, 1, 2]) -> num_output = 3
    classes = [0, 1, 2]
    num_output = len(classes)

    # Example NCHW input consistent with the module; values are ignored.
    key = jax.random.PRNGKey(0)
    x = jax.random.normal(key, (2, 4, 16, 16), dtype=jnp.float32)

    out = random_baseline_forward(x, num_output, jnp.uint32(0))
    out = jax.block_until_ready(out)

    assert out.shape == (x.shape[0], num_output), out.shape
    assert out.dtype == jnp.float32
    assert bool(jnp.all(out >= 0.0)) and bool(jnp.all(out < 1.0)), "values not in [0,1)"

    # Different seeds -> different draws (torch.rand draws fresh values per call).
    out2 = jax.block_until_ready(random_baseline_forward(x, num_output, jnp.uint32(1)))
    assert not bool(jnp.all(out == out2)), "seed change did not change output"

    print("KERNEL_OK")
</pallas_src>

<mosaic_0001>
module attributes {stable_mosaic.version = 11 : i64} {
  func.func @_rand_uniform_kernel(%arg0: memref<1xi32, #tpu.memory_space<smem>>, %arg1: memref<2x3xf32, #tpu.memory_space<vmem>>) attributes {dimension_semantics = [], scalar_prefetch = 0 : i64, scratch_operands = 0 : i64, tpu.core_type = #tpu.core_type<tc>} {
    %0 = tpu.iota {dimensions = array<i32: 0>} : vector<2x3xi32>
    %1 = tpu.iota {dimensions = array<i32: 1>} : vector<2x3xi32>
    %c3_i32 = arith.constant 3 : i32
    %2 = vector.broadcast %c3_i32 : i32 to vector<2x3xi32>
    %3 = arith.muli %0, %2 : vector<2x3xi32>
    %4 = arith.addi %3, %1 : vector<2x3xi32>
    %c0 = arith.constant 0 : index
    %5 = memref.load %arg0[%c0] : memref<1xi32, #tpu.memory_space<smem>>
    %c-1640531527_i32 = arith.constant -1640531527 : i32
    %6 = arith.muli %5, %c-1640531527_i32 : i32
    %7 = vector.broadcast %6 : i32 to vector<2x3xi32>
    %8 = arith.addi %4, %7 : vector<2x3xi32>
    %c16_i32 = arith.constant 16 : i32
    %9 = vector.broadcast %c16_i32 : i32 to vector<2x3xi32>
    %10 = arith.shrui %8, %9 : vector<2x3xi32>
    %11 = arith.xori %8, %10 : vector<2x3xi32>
    %c2146121005_i32 = arith.constant 2146121005 : i32
    %12 = vector.broadcast %c2146121005_i32 : i32 to vector<2x3xi32>
    %13 = arith.muli %11, %12 : vector<2x3xi32>
    %c15_i32 = arith.constant 15 : i32
    %14 = vector.broadcast %c15_i32 : i32 to vector<2x3xi32>
    %15 = arith.shrui %13, %14 : vector<2x3xi32>
    %16 = arith.xori %13, %15 : vector<2x3xi32>
    %c-2073254261_i32 = arith.constant -2073254261 : i32
    %17 = vector.broadcast %c-2073254261_i32 : i32 to vector<2x3xi32>
    %18 = arith.muli %16, %17 : vector<2x3xi32>
    %c16_i32_0 = arith.constant 16 : i32
    %19 = vector.broadcast %c16_i32_0 : i32 to vector<2x3xi32>
    %20 = arith.shrui %18, %19 : vector<2x3xi32>
    %21 = arith.xori %18, %20 : vector<2x3xi32>
    %c9_i32 = arith.constant 9 : i32
    %22 = vector.broadcast %c9_i32 : i32 to vector<2x3xi32>
    %23 = arith.shrui %21, %22 : vector<2x3xi32>
    %c1065353216_i32 = arith.constant 1065353216 : i32
    %24 = vector.broadcast %c1065353216_i32 : i32 to vector<2x3xi32>
    %25 = arith.ori %23, %24 : vector<2x3xi32>
    %26 = tpu.bitcast %25 : vector<2x3xi32> -> vector<2x3xf32>
    %cst = arith.constant 1.000000e+00 : f32
    %27 = vector.broadcast %cst : f32 to vector<2x3xf32>
    %28 = arith.subf %26, %27 : vector<2x3xf32>
    %c0_1 = arith.constant 0 : index
    %c0_2 = arith.constant 0 : index
    %29 = vector.load %arg1[%c0_1, %c0_2] : memref<2x3xf32, #tpu.memory_space<vmem>>, vector<2x3xf32>
    tpu.vector_store %arg1[%c0_1, %c0_2], %28 {strides = array<i32>} : memref<2x3xf32, #tpu.memory_space<vmem>>, vector<2x3xf32>,
    return
  }
}

</mosaic_0001>

<llo_original>
// kernel: random_baseline_forward.1
$region0: #{random_baseline_forward.1}
  #allocation0 [shape = 'u32[]', space=smem, size = 0x4, offset = 0x4, fixed_abs, tag = 'smem constant byte address 0x4 - core index']
  #allocation1 [shape = 'u32[72,128]{1,0:T(1,128)}', space=vmem, size = 0x9000, scoped, tag = 'internal scratch']
  #allocation2 [shape = 'u32[1]{0:T(128)S(6)}', space=smem, size = 0x200, scoped, tag = 'scoped memory for random_baseline_forward.1']
  %s0 = inlined_call_operand.<no memory space> [shape: u32[1], index: 0, kind: input, shape index: {}]
  %s1 = inlined_call_operand.hbm [shape: f32[2,3], index: 1, kind: output, shape index: {}]
  %s2 = sld [smem:[#allocation0]]
  $region14: #{random_baseline_forward.1} parent=0
    _
  %s4 = ssub.s32 1, %s2
  %s5 = scalar_select 0, %s4, %s2
  %6 = sst [smem:[#allocation2]] %s0
  $region1: #{random_baseline_forward.1} parent=0
    #allocation3 [shape = 'u8[1024]{0}', space=vmem, size = 0x400, scoped, tag = 'output window, operand 0, single buffered']
    #allocation4 [shape = 's32[1]{0}', space=sflag, size = 0x4, scoped, tag = 'scoped memory for random_baseline_forward.1']
    %7 = vsyncpa [#allocation4], 0
    // Predicated region
    $region2: #{random_baseline_forward.1} parent=1 // pred_check
      _
    $region3: #{random_baseline_forward.1} parent=1 // pred_check_branch
      %9 = sbr.rel (0) target = $region5
    $region4: #{random_baseline_forward.1} parent=1 // pred_region
      _
    $region5: #{random_baseline_forward.1} parent=1 // pred_fallthru
      _
    %v10 = vlaneseq
    %v11 = vshrl.u32 %v10, 7
    %v12 = vlaneseq
    %v13 = vand.u32 %v12, 127
    %v14 = vmul.u32 %v11, 3
    %v15 = vadd.s32 %v14, %v13
    %s16 = sld [smem:[#allocation2]]
    %s17 = smul.u32 %s16, 2654435769
    %v18 = vstv %s17
    %v19 = vadd.s32 %v15, %v18
    %v20 = vshrl.u32 %v19, 16
    %v21 = vxor.u32 %v19, %v20
    %v22 = vmul.u32 %v21, 2146121005
    %v23 = vshrl.u32 %v22, 15
    %v24 = vxor.u32 %v22, %v23
    %v25 = vmul.u32 %v24, 2221713035
    %v26 = vshrl.u32 %v25, 16
    %v27 = vxor.u32 %v25, %v26
    %v28 = vshrl.u32 %v27, 9
    %v29 = vor.u32 %v28, 1065353216
    %v31 = vsub.f32 %v29, 1.0
    %vm32 = vcmask 17408
    %33 = vst.msk [vmem:[#allocation3] sm:$0x3] %vm32, %v31
    // Predicated region
    $region6: #{random_baseline_forward.1} parent=1 // pred_check
      _
    $region7: #{random_baseline_forward.1} parent=1 // pred_check_branch
      %35 = sbr.rel (0) target = $region9
    $region8: #{random_baseline_forward.1} parent=1 // pred_region
      %37 = vsyncadd [#allocation4], 0
      %s39 = sshll.u32 [#allocation3], 4
      %s40 = int_to_ptr.vmem [resolvable:$true] %s39
      %s41 = sshll.u32 %s1, 4
      %s42 = int_to_ptr.hbm [resolvable:$true] %s41
      %44 = dma.vmem_to_hbm [thread:$0]  %s40, 32, %s42, [#allocation4]
    $region9: #{random_baseline_forward.1} parent=1 // pred_fallthru
      _
    // Predicated region
    $region10: #{random_baseline_forward.1} parent=1 // pred_check
      _
    $region11: #{random_baseline_forward.1} parent=1 // pred_check_branch
      %46 = sbr.rel (0) target = $region13
    $region12: #{random_baseline_forward.1} parent=1 // pred_region
      %48 = dma.done [#allocation4], 32
    $region13: #{random_baseline_forward.1} parent=1 // pred_fallthru
      _
    %49 = vsyncpa [#allocation4], 1

</llo_original>
